<compile_context>
chip_gen: v7x
topology: tpu7x:2x2x1
jax: 0.10.0
libtpu: 0.0.40
codegen_flags: <defaults>
</compile_context>

<pallas_src>
import functools

import jax
import jax.numpy as jnp
from jax.experimental import pallas as pl
from jax.experimental.pallas import tpu as pltpu

EPS = 0.003
H1, H2, H3 = 256, 128, 64
H3_PAD = 128   # fc3 outputs padded to a full lane width
A_PAD = 128    # fc4 outputs padded to a full lane width (lane-dense stores)


def _actor_kernel(x_ref,
                  w1_ref, b1_ref, w2_ref, b2_ref,
                  w3_ref, b3_ref, w4_ref, b4_ref,
                  out_ref, *, action_lim):
    # x / weights arrive in bf16; dots accumulate in f32 on the MXU,
    # bias-add / ReLU / tanh run in f32 on the VPU/EUP.
    h = jnp.dot(x_ref[...], w1_ref[...], preferred_element_type=jnp.float32)
    h = jnp.maximum(h + b1_ref[...], 0.0)                       # relu(fc1)

    h = jnp.dot(h.astype(jnp.bfloat16), w2_ref[...],
                preferred_element_type=jnp.float32)
    h = jnp.maximum(h + b2_ref[...], 0.0)                       # relu(fc2)

    h = jnp.dot(h.astype(jnp.bfloat16), w3_ref[...],
                preferred_element_type=jnp.float32)
    h = jnp.maximum(h + b3_ref[...], 0.0)                       # relu(fc3); padded units stay 0

    h = jnp.dot(h.astype(jnp.bfloat16), w4_ref[...],
                preferred_element_type=jnp.float32)
    h = h + b4_ref[...]                                         # fc4
    out_ref[...] = (jnp.tanh(h) * action_lim).astype(out_ref.dtype)


def prepare_kernel_params(params):
    """Cast weights to bf16 and zero-pad fc3/fc4 to 128-wide (lane-dense)."""
    action_dim = params["w4"].shape[1]
    kp = {
        "w1": params["w1"].astype(jnp.bfloat16),
        "b1": params["b1"].astype(jnp.float32),
        "w2": params["w2"].astype(jnp.bfloat16),
        "b2": params["b2"].astype(jnp.float32),
        "w3": jnp.pad(params["w3"], ((0, 0), (0, H3_PAD - H3))).astype(jnp.bfloat16),
        "b3": jnp.pad(params["b3"], ((0, 0), (0, H3_PAD - H3))).astype(jnp.float32),
        "w4": jnp.pad(params["w4"],
                      ((0, H3_PAD - H3), (0, A_PAD - action_dim))).astype(jnp.bfloat16),
        "b4": jnp.pad(params["b4"], ((0, 0), (0, A_PAD - action_dim))).astype(jnp.float32),
    }
    return kp, action_dim


def actor_forward(state, params, action_lim, *, tile_m=256):
    """state: (B, state_dim) f32.  params: dict of (in,out) weights + (1,out) biases."""
    kp, action_dim = prepare_kernel_params(params)
    B, state_dim = state.shape

    # Batch tiling: TILE_M multiple of 8; weights stay resident across steps.
    b_min = max(8, -(-B // 8) * 8)
    tm = min(tile_m, b_min)
    grid_m = -(-B // tm)
    b_pad = grid_m * tm

    x = state.astype(jnp.bfloat16)
    if b_pad != B:
        x = jnp.pad(x, ((0, b_pad - B), (0, 0)))

    def resident(a):
        return pl.BlockSpec(a.shape, lambda i: (0,) * a.ndim)

    flops = 2 * b_pad * (state_dim * H1 + H1 * H2 + H2 * H3_PAD + H3_PAD * A_PAD)
    bytes_accessed = (x.size * x.dtype.itemsize
                      + sum(int(v.size) * v.dtype.itemsize for v in kp.values())
                      + b_pad * A_PAD * 4)

    out = pl.pallas_call(
        functools.partial(_actor_kernel, action_lim=float(action_lim)),
        out_shape=jax.ShapeDtypeStruct((b_pad, A_PAD), jnp.float32),
        grid=(grid_m,),
        in_specs=[pl.BlockSpec((tm, state_dim), lambda i: (i, 0)),
                  resident(kp["w1"]), resident(kp["b1"]),
                  resident(kp["w2"]), resident(kp["b2"]),
                  resident(kp["w3"]), resident(kp["b3"]),
                  resident(kp["w4"]), resident(kp["b4"])],
        out_specs=pl.BlockSpec((tm, A_PAD), lambda i: (i, 0)),
        compiler_params=pltpu.CompilerParams(
            dimension_semantics=("parallel",)),
        cost_estimate=pl.CostEstimate(
            flops=flops,
            transcendentals=b_pad * A_PAD,
            bytes_accessed=bytes_accessed),
    )(x, kp["w1"], kp["b1"], kp["w2"], kp["b2"],
      kp["w3"], kp["b3"], kp["w4"], kp["b4"])

    return out[:B, :action_dim]


def init_actor_params(key, state_dim, action_dim):
    """Deterministic init mirroring the PyTorch module.

    PyTorch stores Linear weights as (out, in); para_init uses
    v = 1/sqrt(size[0]) = 1/sqrt(out_features).  Biases keep the default
    nn.Linear init: U(-1/sqrt(in_features), 1/sqrt(in_features)).
    Weights here are stored transposed: (in, out).
    """
    dims = [(state_dim, H1), (H1, H2), (H2, H3), (H3, action_dim)]
    params = {}
    for idx, (fin, fout) in enumerate(dims, start=1):
        key, kw, kb = jax.random.split(key, 3)
        if idx < 4:
            vw = 1.0 / jnp.sqrt(jnp.float32(fout))   # para_init: fanin = size[0] = out
        else:
            vw = EPS                                  # fc4: uniform(-EPS, EPS)
        vb = 1.0 / jnp.sqrt(jnp.float32(fin))         # default torch bias init
        params[f"w{idx}"] = jax.random.uniform(kw, (fin, fout), jnp.float32, -vw, vw)
        params[f"b{idx}"] = jax.random.uniform(kb, (1, fout), jnp.float32, -vb, vb)
    return params


def actor_reference_bf16(state, params, action_lim):
    """Pure-JAX reference mirroring the kernel's bf16-weight / f32-accumulate math."""
    kp, action_dim = prepare_kernel_params(params)
    x = state.astype(jnp.bfloat16)
    h = jnp.maximum(jnp.dot(x, kp["w1"], preferred_element_type=jnp.float32) + kp["b1"], 0.0)
    h = jnp.maximum(jnp.dot(h.astype(jnp.bfloat16), kp["w2"],
                            preferred_element_type=jnp.float32) + kp["b2"], 0.0)
    h = jnp.maximum(jnp.dot(h.astype(jnp.bfloat16), kp["w3"],
                            preferred_element_type=jnp.float32) + kp["b3"], 0.0)
    h = jnp.dot(h.astype(jnp.bfloat16), kp["w4"],
                preferred_element_type=jnp.float32) + kp["b4"]
    return (jnp.tanh(h) * action_lim)[:, :action_dim]


def actor_reference_f32(state, params, action_lim):
    """Full-precision reference matching the original PyTorch forward."""
    x = jnp.maximum(state @ params["w1"] + params["b1"], 0.0)
    x = jnp.maximum(x @ params["w2"] + params["b2"], 0.0)
    x = jnp.maximum(x @ params["w3"] + params["b3"], 0.0)
    return jnp.tanh(x @ params["w4"] + params["b4"]) * action_lim


if __name__ == "__main__":
    key = jax.random.PRNGKey(0)
    state_dim, action_dim, action_lim = 16, 4, 2.0
    batch = 4

    key, kp_key, kx_key = jax.random.split(key, 3)
    params = init_actor_params(kp_key, state_dim, action_dim)
    state = jax.random.normal(kx_key, (batch, state_dim), jnp.float32)

    out = actor_forward(state, params, action_lim)
    out = jax.block_until_ready(out)
    assert out.shape == (batch, action_dim)

    # Tight check against the bf16-matched reference (same math as the kernel).
    ref_bf16 = actor_reference_bf16(state, params, action_lim)
    assert jnp.allclose(out, ref_bf16, atol=1e-4, rtol=1e-3), "mismatch vs bf16 reference"

    # Loose sanity check against the full-f32 PyTorch-equivalent forward.
    ref_f32 = actor_reference_f32(state, params, action_lim)
    assert jnp.allclose(out, ref_f32, atol=5e-2, rtol=5e-2), "mismatch vs f32 reference"

    print("KERNEL_OK")
</pallas_src>

<mosaic_0001>
module attributes {stable_mosaic.version = 11 : i64} {
  func.func @_actor_kernel(%arg0: i32, %arg1: memref<8x16xbf16, #tpu.memory_space<vmem>>, %arg2: memref<16x256xbf16, #tpu.memory_space<vmem>>, %arg3: memref<1x256xf32, #tpu.memory_space<vmem>>, %arg4: memref<256x128xbf16, #tpu.memory_space<vmem>>, %arg5: memref<1x128xf32, #tpu.memory_space<vmem>>, %arg6: memref<128x128xbf16, #tpu.memory_space<vmem>>, %arg7: memref<1x128xf32, #tpu.memory_space<vmem>>, %arg8: memref<128x128xbf16, #tpu.memory_space<vmem>>, %arg9: memref<1x128xf32, #tpu.memory_space<vmem>>, %arg10: memref<8x128xf32, #tpu.memory_space<vmem>>) attributes {dimension_semantics = [#tpu.dimension_semantics<parallel>], iteration_bounds = array<i64: 1>, scalar_prefetch = 0 : i64, scratch_operands = 0 : i64, tpu.core_type = #tpu.core_type<tc>, window_params = [{transform_indices = @transform_0, window_bounds = array<i64: 8, 16>}, {pipeline_mode = #tpu.pipeline_mode<synchronous>, transform_indices = @transform_1, window_bounds = array<i64: 16, 256>}, {pipeline_mode = #tpu.pipeline_mode<synchronous>, transform_indices = @transform_2, window_bounds = array<i64: 1, 256>}, {pipeline_mode = #tpu.pipeline_mode<synchronous>, transform_indices = @transform_3, window_bounds = array<i64: 256, 128>}, {pipeline_mode = #tpu.pipeline_mode<synchronous>, transform_indices = @transform_4, window_bounds = array<i64: 1, 128>}, {pipeline_mode = #tpu.pipeline_mode<synchronous>, transform_indices = @transform_5, window_bounds = array<i64: 128, 128>}, {pipeline_mode = #tpu.pipeline_mode<synchronous>, transform_indices = @transform_6, window_bounds = array<i64: 1, 128>}, {pipeline_mode = #tpu.pipeline_mode<synchronous>, transform_indices = @transform_7, window_bounds = array<i64: 128, 128>}, {pipeline_mode = #tpu.pipeline_mode<synchronous>, transform_indices = @transform_8, window_bounds = array<i64: 1, 128>}, {transform_indices = @transform_9, window_bounds = array<i64: 8, 128>}]} {
    %c0 = arith.constant 0 : index
    %c0_0 = arith.constant 0 : index
    %0 = vector.load %arg1[%c0, %c0_0] : memref<8x16xbf16, #tpu.memory_space<vmem>>, vector<8x16xbf16>
    %c0_1 = arith.constant 0 : index
    %c0_2 = arith.constant 0 : index
    %1 = vector.load %arg2[%c0_1, %c0_2] : memref<16x256xbf16, #tpu.memory_space<vmem>>, vector<16x256xbf16>
    %cst = arith.constant dense<0.000000e+00> : vector<8x256xf32>
    %2 = tpu.matmul %0, %1, %cst {dimension_numbers = #tpu.dot_dimension_numbers<[1], [0], [0], [1], [0, 0, 1, 1], [], []>} : vector<8x16xbf16>, vector<16x256xbf16>, vector<8x256xf32> -> vector<8x256xf32>
    %c0_3 = arith.constant 0 : index
    %c0_4 = arith.constant 0 : index
    %3 = vector.load %arg3[%c0_3, %c0_4] : memref<1x256xf32, #tpu.memory_space<vmem>>, vector<1x256xf32>
    %4 = vector.broadcast %3 : vector<1x256xf32> to vector<8x256xf32>
    %5 = arith.addf %2, %4 : vector<8x256xf32>
    %cst_5 = arith.constant 0.000000e+00 : f32
    %6 = vector.broadcast %cst_5 : f32 to vector<8x256xf32>
    %7 = arith.maximumf %5, %6 : vector<8x256xf32>
    %8 = arith.truncf %7 : vector<8x256xf32> to vector<8x256xbf16>
    %c0_6 = arith.constant 0 : index
    %c0_7 = arith.constant 0 : index
    %9 = vector.load %arg4[%c0_6, %c0_7] : memref<256x128xbf16, #tpu.memory_space<vmem>>, vector<256x128xbf16>
    %cst_8 = arith.constant dense<0.000000e+00> : vector<8x128xf32>
    %10 = tpu.matmul %8, %9, %cst_8 {dimension_numbers = #tpu.dot_dimension_numbers<[1], [0], [0], [1], [0, 0, 1, 1], [], []>} : vector<8x256xbf16>, vector<256x128xbf16>, vector<8x128xf32> -> vector<8x128xf32>
    %c0_9 = arith.constant 0 : index
    %c0_10 = arith.constant 0 : index
    %11 = vector.load %arg5[%c0_9, %c0_10] : memref<1x128xf32, #tpu.memory_space<vmem>>, vector<1x128xf32>
    %12 = vector.broadcast %11 : vector<1x128xf32> to vector<8x128xf32>
    %13 = arith.addf %10, %12 : vector<8x128xf32>
    %cst_11 = arith.constant 0.000000e+00 : f32
    %14 = vector.broadcast %cst_11 : f32 to vector<8x128xf32>
    %15 = arith.maximumf %13, %14 : vector<8x128xf32>
    %16 = arith.truncf %15 : vector<8x128xf32> to vector<8x128xbf16>
    %c0_12 = arith.constant 0 : index
    %c0_13 = arith.constant 0 : index
    %17 = vector.load %arg6[%c0_12, %c0_13] : memref<128x128xbf16, #tpu.memory_space<vmem>>, vector<128x128xbf16>
    %cst_14 = arith.constant dense<0.000000e+00> : vector<8x128xf32>
    %18 = tpu.matmul %16, %17, %cst_14 {dimension_numbers = #tpu.dot_dimension_numbers<[1], [0], [0], [1], [0, 0, 1, 1], [], []>} : vector<8x128xbf16>, vector<128x128xbf16>, vector<8x128xf32> -> vector<8x128xf32>
    %c0_15 = arith.constant 0 : index
    %c0_16 = arith.constant 0 : index
    %19 = vector.load %arg7[%c0_15, %c0_16] : memref<1x128xf32, #tpu.memory_space<vmem>>, vector<1x128xf32>
    %20 = vector.broadcast %19 : vector<1x128xf32> to vector<8x128xf32>
    %21 = arith.addf %18, %20 : vector<8x128xf32>
    %cst_17 = arith.constant 0.000000e+00 : f32
    %22 = vector.broadcast %cst_17 : f32 to vector<8x128xf32>
    %23 = arith.maximumf %21, %22 : vector<8x128xf32>
    %24 = arith.truncf %23 : vector<8x128xf32> to vector<8x128xbf16>
    %c0_18 = arith.constant 0 : index
    %c0_19 = arith.constant 0 : index
    %25 = vector.load %arg8[%c0_18, %c0_19] : memref<128x128xbf16, #tpu.memory_space<vmem>>, vector<128x128xbf16>
    %cst_20 = arith.constant dense<0.000000e+00> : vector<8x128xf32>
    %26 = tpu.matmul %24, %25, %cst_20 {dimension_numbers = #tpu.dot_dimension_numbers<[1], [0], [0], [1], [0, 0, 1, 1], [], []>} : vector<8x128xbf16>, vector<128x128xbf16>, vector<8x128xf32> -> vector<8x128xf32>
    %c0_21 = arith.constant 0 : index
    %c0_22 = arith.constant 0 : index
    %27 = vector.load %arg9[%c0_21, %c0_22] : memref<1x128xf32, #tpu.memory_space<vmem>>, vector<1x128xf32>
    %28 = vector.broadcast %27 : vector<1x128xf32> to vector<8x128xf32>
    %29 = arith.addf %26, %28 : vector<8x128xf32>
    %30 = math.tanh %29 : vector<8x128xf32>
    %cst_23 = arith.constant 2.000000e+00 : f32
    %31 = vector.broadcast %cst_23 : f32 to vector<8x128xf32>
    %32 = arith.mulf %30, %31 : vector<8x128xf32>
    %c0_24 = arith.constant 0 : index
    %c0_25 = arith.constant 0 : index
    %33 = vector.load %arg10[%c0_24, %c0_25] : memref<8x128xf32, #tpu.memory_space<vmem>>, vector<8x128xf32>
    tpu.vector_store %arg10[%c0_24, %c0_25], %32 {strides = array<i32>} : memref<8x128xf32, #tpu.memory_space<vmem>>, vector<8x128xf32>,
    return
  }
  func.func @transform_0(%arg0: i32) -> (i32, i32) {
    %c0_i32 = arith.constant 0 : i32
    %c0_i32_0 = arith.constant 0 : i32
    return %arg0, %c0_i32 : i32, i32
  }
  func.func @transform_1(%arg0: i32) -> (i32, i32) {
    %c0_i32 = arith.constant 0 : i32
    %c0_i32_0 = arith.constant 0 : i32
    %c0_i32_1 = arith.constant 0 : i32
    return %c0_i32, %c0_i32_0 : i32, i32
  }
  func.func @transform_2(%arg0: i32) -> (i32, i32) {
    %c0_i32 = arith.constant 0 : i32
    %c0_i32_0 = arith.constant 0 : i32
    %c0_i32_1 = arith.constant 0 : i32
    return %c0_i32, %c0_i32_0 : i32, i32
  }
  func.func @transform_3(%arg0: i32) -> (i32, i32) {
    %c0_i32 = arith.constant 0 : i32
    %c0_i32_0 = arith.constant 0 : i32
    %c0_i32_1 = arith.constant 0 : i32
    return %c0_i32, %c0_i32_0 : i32, i32
  }
  func.func @transform_4(%arg0: i32) -> (i32, i32) {
    %c0_i32 = arith.constant 0 : i32
    %c0_i32_0 = arith.constant 0 : i32
    %c0_i32_1 = arith.constant 0 : i32
    return %c0_i32, %c0_i32_0 : i32, i32
  }
  func.func @transform_5(%arg0: i32) -> (i32, i32) {
    %c0_i32 = arith.constant 0 : i32
    %c0_i32_0 = arith.constant 0 : i32
    %c0_i32_1 = arith.constant 0 : i32
    return %c0_i32, %c0_i32_0 : i32, i32
  }
  func.func @transform_6(%arg0: i32) -> (i32, i32) {
    %c0_i32 = arith.constant 0 : i32
    %c0_i32_0 = arith.constant 0 : i32
    %c0_i32_1 = arith.constant 0 : i32
    return %c0_i32, %c0_i32_0 : i32, i32
  }
  func.func @transform_7(%arg0: i32) -> (i32, i32) {
    %c0_i32 = arith.constant 0 : i32
    %c0_i32_0 = arith.constant 0 : i32
    %c0_i32_1 = arith.constant 0 : i32
    return %c0_i32, %c0_i32_0 : i32, i32
  }
  func.func @transform_8(%arg0: i32) -> (i32, i32) {
    %c0_i32 = arith.constant 0 : i32
    %c0_i32_0 = arith.constant 0 : i32
    %c0_i32_1 = arith.constant 0 : i32
    return %c0_i32, %c0_i32_0 : i32, i32
  }
  func.func @transform_9(%arg0: i32) -> (i32, i32) {
    %c0_i32 = arith.constant 0 : i32
    %c0_i32_0 = arith.constant 0 : i32
    return %arg0, %c0_i32 : i32, i32
  }
}

</mosaic_0001>

<llo_original>
// kernel: tpu_custom_call.1
$region0: #{tpu_custom_call.1}
  #allocation0 [shape = 'u32[]', space=smem, size = 0x4, offset = 0x4, fixed_abs, tag = 'smem constant byte address 0x4 - core index']
  #allocation1 [shape = 'u32[144,128]{1,0:T(1,128)}', space=vmem, size = 0x12000, scoped, tag = 'internal scratch']
  %s0 = inlined_call_operand.hbm [shape: bf16[8,16], index: 0, kind: input, shape index: {}]
  %s1 = inlined_call_operand.hbm [shape: bf16[16,256], index: 1, kind: input, shape index: {}]
  %s2 = inlined_call_operand.vmem [shape: f32[1,256], index: 2, kind: input, shape index: {}]
  %s3 = inlined_call_operand.hbm [shape: bf16[256,128], index: 3, kind: input, shape index: {}]
  %s4 = inlined_call_operand.vmem [shape: f32[1,128], index: 4, kind: input, shape index: {}]
  %s5 = inlined_call_operand.hbm [shape: bf16[128,128], index: 5, kind: input, shape index: {}]
  %s6 = inlined_call_operand.vmem [shape: f32[1,128], index: 6, kind: input, shape index: {}]
  %s7 = inlined_call_operand.hbm [shape: bf16[128,128], index: 7, kind: input, shape index: {}]
  %s8 = inlined_call_operand.vmem [shape: f32[1,128], index: 8, kind: input, shape index: {}]
  %s9 = inlined_call_operand.hbm [shape: f32[8,128], index: 9, kind: output, shape index: {}]
  %s10 = sld [smem:[#allocation0]]
  $region66: #{tpu_custom_call.1} parent=0
    _
  %s12 = ssub.s32 1, %s10
  %s13 = scalar_select 0, %s12, %s10
  $region1: #{tpu_custom_call.1} parent=0
    #allocation2 [shape = 'u8[2048]{0}', space=vmem, size = 0x800, scoped, tag = 'input window, operand 0, single buffered']
    #allocation3 [shape = 's32[1]{0}', space=sflag, size = 0x4, scoped, tag = 'scoped memory for tpu_custom_call.1']
    #allocation4 [shape = 's32[1]{0}', space=sflag, size = 0x4, scoped, tag = 'scoped memory for tpu_custom_call.1']
    #allocation5 [shape = 'u8[8192]{0}', space=vmem, size = 0x2000, scoped, tag = 'input window, operand 1, single buffered']
    #allocation6 [shape = 's32[1]{0}', space=sflag, size = 0x4, scoped, tag = 'scoped memory for tpu_custom_call.1']
    #allocation7 [shape = 'u8[65536]{0}', space=vmem, size = 0x10000, scoped, tag = 'input window, operand 3, single buffered']
    #allocation8 [shape = 'u8[32768]{0}', space=vmem, size = 0x8000, scoped, tag = 'input window, operand 5, single buffered']
    #allocation9 [shape = 's32[1]{0}', space=sflag, size = 0x4, scoped, tag = 'scoped memory for tpu_custom_call.1']
    #allocation10 [shape = 'u8[32768]{0}', space=vmem, size = 0x8000, scoped, tag = 'input window, operand 7, single buffered']
    #allocation11 [shape = 'u8[4096]{0}', space=vmem, size = 0x1000, scoped, tag = 'output window, operand 0, single buffered']
    %14 = vsyncpa [#allocation3], 0
    %15 = vsyncpa [#allocation6], 0
    %16 = vsyncpa [#allocation9], 0
    %17 = vsyncpa [#allocation4], 0
    // Predicated region
    $region2: #{tpu_custom_call.1} parent=1 // pred_check
      _
    $region3: #{tpu_custom_call.1} parent=1 // pred_check_branch
      %19 = sbr.rel (0) target = $region5
    $region4: #{tpu_custom_call.1} parent=1 // pred_region
      %s21 = ssub.s32 64, 64
      %22 = vsyncadd [#allocation3], %s21
      %s24 = sshll.u32 [#allocation2], 4
      %s25 = int_to_ptr.vmem [resolvable:$true] %s24
      %27 = dma.hbm_to_vmem [thread:$0]  %s0, 64, %s25, [#allocation3]
    $region5: #{tpu_custom_call.1} parent=1 // pred_fallthru
      _
    // Predicated region
    $region6: #{tpu_custom_call.1} parent=1 // pred_check
      _
    $region7: #{tpu_custom_call.1} parent=1 // pred_check_branch
      %29 = sbr.rel (0) target = $region9
    $region8: #{tpu_custom_call.1} parent=1 // pred_region
      %s31 = ssub.s32 256, 256
      %32 = vsyncadd [#allocation6], %s31
      %s33 = sshll.u32 [#allocation5], 4
      %s34 = int_to_ptr.vmem [resolvable:$true] %s33
      %39 = dma.hbm_to_vmem [thread:$0]  %s1, 256, %s34, [#allocation6], 128, 128, 8
    $region9: #{tpu_custom_call.1} parent=1 // pred_fallthru
      _
    // Predicated region
    $region10: #{tpu_custom_call.1} parent=1 // pred_check
      _
    $region11: #{tpu_custom_call.1} parent=1 // pred_check_branch
      %41 = sbr.rel (0) target = $region13
    $region12: #{tpu_custom_call.1} parent=1 // pred_region
      _
    $region13: #{tpu_custom_call.1} parent=1 // pred_fallthru
      _
    // Predicated region
    $region14: #{tpu_custom_call.1} parent=1 // pred_check
      _
    $region15: #{tpu_custom_call.1} parent=1 // pred_check_branch
      %43 = sbr.rel (0) target = $region17
    $region16: #{tpu_custom_call.1} parent=1 // pred_region
      %s45 = ssub.s32 2048, 2048
      %46 = vsyncadd [#allocation6], %s45
      %s47 = sshll.u32 [#allocation7], 4
      %s48 = int_to_ptr.vmem [resolvable:$true] %s47
      %53 = dma.hbm_to_vmem [thread:$0]  %s3, 2048, %s48, [#allocation6], 64, 64, 4
    $region17: #{tpu_custom_call.1} parent=1 // pred_fallthru
      _
    // Predicated region
    $region18: #{tpu_custom_call.1} parent=1 // pred_check
      _
    $region19: #{tpu_custom_call.1} parent=1 // pred_check_branch
      %55 = sbr.rel (0) target = $region21
    $region20: #{tpu_custom_call.1} parent=1 // pred_region
      _
    $region21: #{tpu_custom_call.1} parent=1 // pred_fallthru
      _
    // Predicated region
    $region22: #{tpu_custom_call.1} parent=1 // pred_check
      _
    $region23: #{tpu_custom_call.1} parent=1 // pred_check_branch
      %57 = sbr.rel (0) target = $region25
    $region24: #{tpu_custom_call.1} parent=1 // pred_region
      %s59 = ssub.s32 1024, 1024
      %60 = vsyncadd [#allocation9], %s59
      %s61 = sshll.u32 [#allocation8], 4
      %s62 = int_to_ptr.vmem [resolvable:$true] %s61
      %67 = dma.hbm_to_vmem [thread:$0]  %s5, 1024, %s62, [#allocation9], 64, 64, 4
    $region25: #{tpu_custom_call.1} parent=1 // pred_fallthru
      _
    // Predicated region
    $region26: #{tpu_custom_call.1} parent=1 // pred_check
      _
    $region27: #{tpu_custom_call.1} parent=1 // pred_check_branch
      %69 = sbr.rel (0) target = $region29
    $region28: #{tpu_custom_call.1} parent=1 // pred_region
      _
    $region29: #{tpu_custom_call.1} parent=1 // pred_fallthru
      _
    // Predicated region
    $region30: #{tpu_custom_call.1} parent=1 // pred_check
      _
    $region31: #{tpu_custom_call.1} parent=1 // pred_check_branch
      %71 = sbr.rel (0) target = $region33
    $region32: #{tpu_custom_call.1} parent=1 // pred_region
      %s73 = ssub.s32 1024, 1024
      %74 = vsyncadd [#allocation9], %s73
      %s75 = sshll.u32 [#allocation10], 4
      %s76 = int_to_ptr.vmem [resolvable:$true] %s75
      %81 = dma.hbm_to_vmem [thread:$0]  %s7, 1024, %s76, [#allocation9], 64, 64, 4
    $region33: #{tpu_custom_call.1} parent=1 // pred_fallthru
      _
    // Predicated region
    $region34: #{tpu_custom_call.1} parent=1 // pred_check
      _
    $region35: #{tpu_custom_call.1} parent=1 // pred_check_branch
      %83 = sbr.rel (0) target = $region37
    $region36: #{tpu_custom_call.1} parent=1 // pred_region
      _
    $region37: #{tpu_custom_call.1} parent=1 // pred_fallthru
      _
    // Predicated region
    $region38: #{tpu_custom_call.1} parent=1 // pred_check
      _
    $region39: #{tpu_custom_call.1} parent=1 // pred_check_branch
      %85 = sbr.rel (0) target = $region41
    $region40: #{tpu_custom_call.1} parent=1 // pred_region
      %86 = dma.done [#allocation3], 64
    $region41: #{tpu_custom_call.1} parent=1 // pred_fallthru
      _
    // Predicated region
    $region42: #{tpu_custom_call.1} parent=1 // pred_check
      _
    $region43: #{tpu_custom_call.1} parent=1 // pred_check_branch
      %88 = sbr.rel (0) target = $region45
    $region44: #{tpu_custom_call.1} parent=1 // pred_region
      %89 = dma.done [#allocation6], 256
    $region45: #{tpu_custom_call.1} parent=1 // pred_fallthru
      _
    // Predicated region
    $region46: #{tpu_custom_call.1} parent=1 // pred_check
      _
    $region47: #{tpu_custom_call.1} parent=1 // pred_check_branch
      %91 = sbr.rel (0) target = $region49
    $region48: #{tpu_custom_call.1} parent=1 // pred_region
      %92 = dma.done [#allocation6], 2048
    $region49: #{tpu_custom_call.1} parent=1 // pred_fallthru
      _
    // Predicated region
    $region50: #{tpu_custom_call.1} parent=1 // pred_check
      _
    $region51: #{tpu_custom_call.1} parent=1 // pred_check_branch
      %94 = sbr.rel (0) target = $region53
    $region52: #{tpu_custom_call.1} parent=1 // pred_region
      %95 = dma.done [#allocation9], 1024
    $region53: #{tpu_custom_call.1} parent=1 // pred_fallthru
      _
    // Predicated region
    $region54: #{tpu_custom_call.1} parent=1 // pred_check
      _
    $region55: #{tpu_custom_call.1} parent=1 // pred_check_branch
      %97 = sbr.rel (0) target = $region57
    $region56: #{tpu_custom_call.1} parent=1 // pred_region
      %98 = dma.done [#allocation9], 1024
    $region57: #{tpu_custom_call.1} parent=1 // pred_fallthru
      _
    %v100 = vld [vmem:[#allocation2] sm:$0xf]
    %v101 = vld [vmem:[#allocation5] sm:$0xff]
    %v102 = vld [vmem:[#allocation5 + $0x8] sm:$0xff]
    %v103 = vld [vmem:[%s2] sm:$0x3]
    %v105 = vlaneseq
    %v106 = vshrl.u32 %v105, 7
    %v107 = vsub.s32 0, %v106
    %v108 = vrot.slane %v103, %v107
    %v109 = vlaneseq
    %v110 = vshrl.u32 %v109, 7
    %v111 = vsub.s32 1, %v110
    %v112 = vrot.slane %v103, %v111
    %v117 = vunpack.c.l.b16 %v101
    %v118 = vunpack.c.h.b16 %v101
    %v119 = vunpack.c.l.b16 %v102
    %v120 = vunpack.c.h.b16 %v102
    %v121 = vpack.c.b16 %v119, %v117
    %v122 = vpack.c.b16 %v120, %v118
    %vm125 = vcmask 130048
    %v127 = vsel %vm125, %v100, 0
    %129 = vmatprep.subr.bf16.mxu0 %v122
    %130 = vmatpush1.bf16.msra.mxu0 %v121
    %131 = vmatprep.subr.bf16.mxu0 0
    %132 = vmatpush1.bf16.msra.mxu0 0
    %133 = vmatprep.subr.bf16.mxu0 0
    %134 = vmatpush1.bf16.msra.mxu0 0
    %135 = vmatprep.subr.bf16.mxu0 0
    %136 = vmatpush1.bf16.msra.mxu0 0
    %137 = vmatprep.subr.bf16.mxu0 0
    %138 = vmatpush1.bf16.msra.mxu0 0
    %139 = vmatprep.subr.bf16.mxu0 0
    %140 = vmatpush1.bf16.msra.mxu0 0
    %141 = vmatprep.subr.bf16.mxu0 0
    %142 = vmatpush1.bf16.msra.mxu0 0
    %143 = vmatprep.subr.bf16.mxu0 0
    %144 = vmatpush1.bf16.msra.mxu0 0
    %145 = vmatprep.subr.bf16.mxu0 0
    %146 = vmatpush1.bf16.msra.mxu0 0
    %147 = vmatprep.subr.bf16.mxu0 0
    %148 = vmatpush1.bf16.msra.mxu0 0
    %149 = vmatprep.subr.bf16.mxu0 0
    %150 = vmatpush1.bf16.msra.mxu0 0
    %151 = vmatprep.subr.bf16.mxu0 0
    %152 = vmatpush1.bf16.msra.mxu0 0
    %153 = vmatprep.subr.bf16.mxu0 0
    %154 = vmatpush1.bf16.msra.mxu0 0
    %155 = vmatprep.subr.bf16.mxu0 0
    %156 = vmatpush1.bf16.msra.mxu0 0
    %157 = vmatprep.subr.bf16.mxu0 0
    %158 = vmatpush1.bf16.msra.mxu0 0
    %159 = vmatprep.subr.bf16.mxu0 0
    %160 = vmatpush1.bf16.msra.mxu0 0
    %161 = vmatprep.mubr.bf16.mxu0 0
    %162 = vmatmul.mubr.bf16.gmra.mrb[0].mxu0 %v127
    %v163 = vpop.f32.mrb[0].mxu0
    %v164 = vadd.f32 %v108, %v163
    %v165 = vpop.f32.mrb[0].mxu0
    %v166 = vadd.f32 %v112, %v165
    %v167 = vpop.f32.mrb[0].mxu0
    %v168 = vpop.f32.mrb[0].mxu0
    %169 = vdwg.mxu0
    %v170 = vmax.f32 %v164, 0.0
    %v171 = vmax.f32 %v166, 0.0
    %v172 = vpack.c.bf16 %v170, %v170
    %v173 = vpack.c.bf16 %v171, %v171
    %v174 = vld [vmem:[#allocation7] sm:$0xf]
    %v175 = vld [vmem:[#allocation7 + $0x4] sm:$0xf]
    %v176 = vld [vmem:[#allocation7 + $0x8] sm:$0xf]
    %v177 = vld [vmem:[#allocation7 + $0xc] sm:$0xf]
    %v178 = vld [vmem:[#allocation7 + $0x10] sm:$0xf]
    %v179 = vld [vmem:[#allocation7 + $0x14] sm:$0xf]
    %v180 = vld [vmem:[#allocation7 + $0x18] sm:$0xf]
    %v181 = vld [vmem:[#allocation7 + $0x1c] sm:$0xf]
    %v182 = vld [vmem:[#allocation7 + $0x20] sm:$0xf]
    %v183 = vld [vmem:[#allocation7 + $0x24] sm:$0xf]
    %v184 = vld [vmem:[#allocation7 + $0x28] sm:$0xf]
    %v185 = vld [vmem:[#allocation7 + $0x2c] sm:$0xf]
    %v186 = vld [vmem:[#allocation7 + $0x30] sm:$0xf]
    %v187 = vld [vmem:[#allocation7 + $0x34] sm:$0xf]
    %v188 = vld [vmem:[#allocation7 + $0x38] sm:$0xf]
    %v189 = vld [vmem:[#allocation7 + $0x3c] sm:$0xf]
    %v190 = vld [vmem:[#allocation7 + $0x40] sm:$0xf]
    %v191 = vld [vmem:[#allocation7 + $0x44] sm:$0xf]
    %v192 = vld [vmem:[#allocation7 + $0x48] sm:$0xf]
    %v193 = vld [vmem:[#allocation7 + $0x4c] sm:$0xf]
    %v194 = vld [vmem:[#allocation7 + $0x50] sm:$0xf]
    %v195 = vld [vmem:[#allocation7 + $0x54] sm:$0xf]
    %v196 = vld [vmem:[#allocation7 + $0x58] sm:$0xf]
    %v197 = vld [vmem:[#allocation7 + $0x5c] sm:$0xf]
    %v198 = vld [vmem:[#allocation7 + $0x60] sm:$0xf]
    %v199 = vld [vmem:[#allocation7 + $0x64] sm:$0xf]
    %v200 = vld [vmem:[#allocation7 + $0x68] sm:$0xf]
    %v201 = vld [vmem:[#allocation7 + $0x6c] sm:$0xf]
    %v202 = vld [vmem:[#allocation7 + $0x70] sm:$0xf]
    %v203 = vld [vmem:[#allocation7 + $0x74] sm:$0xf]
    %v204 = vld [vmem:[#allocation7 + $0x78] sm:$0xf]
    %v205 = vld [vmem:[#allocation7 + $0x7c] sm:$0xf]
    %v206 = vld [vmem:[%s4] sm:$0x1]
    %v208 = vlaneseq
    %v209 = vshrl.u32 %v208, 7
    %v210 = vsub.s32 0, %v209
    %v211 = vrot.slane %v206, %v210
    %v245 = vunpack.c.l.b16 %v174
    %v246 = vunpack.c.l.b16 %v175
    %v247 = vunpack.c.l.b16 %v176
    %v248 = vunpack.c.l.b16 %v177
    %v249 = vunpack.c.l.b16 %v178
    %v250 = vunpack.c.l.b16 %v179
    %v251 = vunpack.c.l.b16 %v180
    %v252 = vunpack.c.l.b16 %v181
    %v253 = vunpack.c.l.b16 %v182
    %v254 = vunpack.c.l.b16 %v183
    %v255 = vunpack.c.l.b16 %v184
    %v256 = vunpack.c.l.b16 %v185
    %v257 = vunpack.c.l.b16 %v186
    %v258 = vunpack.c.l.b16 %v187
    %v259 = vunpack.c.l.b16 %v188
    %v260 = vunpack.c.l.b16 %v189
    %v261 = vunpack.c.l.b16 %v190
    %v262 = vunpack.c.l.b16 %v191
    %v263 = vunpack.c.l.b16 %v192
    %v264 = vunpack.c.l.b16 %v193
    %v265 = vunpack.c.l.b16 %v194
    %v266 = vunpack.c.l.b16 %v195
    %v267 = vunpack.c.l.b16 %v196
    %v268 = vunpack.c.l.b16 %v197
    %v269 = vunpack.c.l.b16 %v198
    %v270 = vunpack.c.l.b16 %v199
    %v271 = vunpack.c.l.b16 %v200
    %v272 = vunpack.c.l.b16 %v201
    %v273 = vunpack.c.l.b16 %v202
    %v274 = vunpack.c.l.b16 %v203
    %v275 = vunpack.c.l.b16 %v204
    %v276 = vunpack.c.l.b16 %v205
    %v277 = vpack.c.b16 %v246, %v245
    %v278 = vpack.c.b16 %v248, %v247
    %v279 = vpack.c.b16 %v250, %v249
    %v280 = vpack.c.b16 %v252, %v251
    %v281 = vpack.c.b16 %v254, %v253
    %v282 = vpack.c.b16 %v256, %v255
    %v283 = vpack.c.b16 %v258, %v257
    %v284 = vpack.c.b16 %v260, %v259
    %v285 = vpack.c.b16 %v262, %v261
    %v286 = vpack.c.b16 %v264, %v263
    %v287 = vpack.c.b16 %v266, %v265
    %v288 = vpack.c.b16 %v268, %v267
    %v289 = vpack.c.b16 %v270, %v269
    %v290 = vpack.c.b16 %v272, %v271
    %v291 = vpack.c.b16 %v274, %v273
    %v292 = vpack.c.b16 %v276, %v275
    %309 = vmatprep.subr.bf16.mxu0 0
    %310 = vmatpush1.bf16.msra.mxu0 %v277
    %311 = vmatprep.subr.bf16.mxu0 0
    %312 = vmatpush1.bf16.msra.mxu0 %v278
    %313 = vmatprep.subr.bf16.mxu0 0
    %314 = vmatpush1.bf16.msra.mxu0 %v279
    %315 = vmatprep.subr.bf16.mxu0 0
    %316 = vmatpush1.bf16.msra.mxu0 %v280
    %317 = vmatprep.subr.bf16.mxu0 0
    %318 = vmatpush1.bf16.msra.mxu0 %v281
    %319 = vmatprep.subr.bf16.mxu0 0
    %320 = vmatpush1.bf16.msra.mxu0 %v282
    %321 = vmatprep.subr.bf16.mxu0 0
    %322 = vmatpush1.bf16.msra.mxu0 %v283
    %323 = vmatprep.subr.bf16.mxu0 0
    %324 = vmatpush1.bf16.msra.mxu0 %v284
    %325 = vmatprep.subr.bf16.mxu0 0
    %326 = vmatpush1.bf16.msra.mxu0 %v285
    %327 = vmatprep.subr.bf16.mxu0 0
    %328 = vmatpush1.bf16.msra.mxu0 %v286
    %329 = vmatprep.subr.bf16.mxu0 0
    %330 = vmatpush1.bf16.msra.mxu0 %v287
    %331 = vmatprep.subr.bf16.mxu0 0
    %332 = vmatpush1.bf16.msra.mxu0 %v288
    %333 = vmatprep.subr.bf16.mxu0 0
    %334 = vmatpush1.bf16.msra.mxu0 %v289
    %335 = vmatprep.subr.bf16.mxu0 0
    %336 = vmatpush1.bf16.msra.mxu0 %v290
    %337 = vmatprep.subr.bf16.mxu0 0
    %338 = vmatpush1.bf16.msra.mxu0 %v291
    %339 = vmatprep.subr.bf16.mxu0 0
    %340 = vmatpush1.bf16.msra.mxu0 %v292
    %341 = vmatprep.mubr.bf16.mxu0 %v173
    %342 = vmatmul.mubr.bf16.gmra.mrb[0].mxu0 %v172
    %v343 = vpop.f32.mrb[0].mxu0
    %v344 = vadd.f32 %v211, %v343
    %v345 = vpop.f32.mrb[0].mxu0
    %v346 = vpop.f32.mrb[0].mxu0
    %v347 = vpop.f32.mrb[0].mxu0
    %348 = vdwg.mxu0
    %v349 = vmax.f32 %v344, 0.0
    %v350 = vpack.c.bf16 %v349, %v349
    %v351 = vld [vmem:[#allocation8] sm:$0xf]
    %v352 = vld [vmem:[#allocation8 + $0x4] sm:$0xf]
    %v353 = vld [vmem:[#allocation8 + $0x8] sm:$0xf]
    %v354 = vld [vmem:[#allocation8 + $0xc] sm:$0xf]
    %v355 = vld [vmem:[#allocation8 + $0x10] sm:$0xf]
    %v356 = vld [vmem:[#allocation8 + $0x14] sm:$0xf]
    %v357 = vld [vmem:[#allocation8 + $0x18] sm:$0xf]
    %v358 = vld [vmem:[#allocation8 + $0x1c] sm:$0xf]
    %v359 = vld [vmem:[#allocation8 + $0x20] sm:$0xf]
    %v360 = vld [vmem:[#allocation8 + $0x24] sm:$0xf]
    %v361 = vld [vmem:[#allocation8 + $0x28] sm:$0xf]
    %v362 = vld [vmem:[#allocation8 + $0x2c] sm:$0xf]
    %v363 = vld [vmem:[#allocation8 + $0x30] sm:$0xf]
    %v364 = vld [vmem:[#allocation8 + $0x34] sm:$0xf]
    %v365 = vld [vmem:[#allocation8 + $0x38] sm:$0xf]
    %v366 = vld [vmem:[#allocation8 + $0x3c] sm:$0xf]
    %v367 = vld [vmem:[%s6] sm:$0x1]
    %v369 = vlaneseq
    %v370 = vshrl.u32 %v369, 7
    %v371 = vsub.s32 0, %v370
    %v372 = vrot.slane %v367, %v371
    %v390 = vunpack.c.l.b16 %v351
    %v391 = vunpack.c.l.b16 %v352
    %v392 = vunpack.c.l.b16 %v353
    %v393 = vunpack.c.l.b16 %v354
    %v394 = vunpack.c.l.b16 %v355
    %v395 = vunpack.c.l.b16 %v356
    %v396 = vunpack.c.l.b16 %v357
    %v397 = vunpack.c.l.b16 %v358
    %v398 = vunpack.c.l.b16 %v359
    %v399 = vunpack.c.l.b16 %v360
    %v400 = vunpack.c.l.b16 %v361
    %v401 = vunpack.c.l.b16 %v362
    %v402 = vunpack.c.l.b16 %v363
    %v403 = vunpack.c.l.b16 %v364
    %v404 = vunpack.c.l.b16 %v365
    %v405 = vunpack.c.l.b16 %v366
    %v406 = vpack.c.b16 %v391, %v390
    %v407 = vpack.c.b16 %v393, %v392
    %v408 = vpack.c.b16 %v395, %v394
    %v409 = vpack.c.b16 %v397, %v396
    %v410 = vpack.c.b16 %v399, %v398
    %v411 = vpack.c.b16 %v401, %v400
    %v412 = vpack.c.b16 %v403, %v402
    %v413 = vpack.c.b16 %v405, %v404
    %422 = vmatprep.subr.bf16.mxu0 0
    %423 = vmatpush1.bf16.msra.mxu0 %v406
    %424 = vmatprep.subr.bf16.mxu0 0
    %425 = vmatpush1.bf16.msra.mxu0 %v407
    %426 = vmatprep.subr.bf16.mxu0 0
    %427 = vmatpush1.bf16.msra.mxu0 %v408
    %428 = vmatprep.subr.bf16.mxu0 0
    %429 = vmatpush1.bf16.msra.mxu0 %v409
    %430 = vmatprep.subr.bf16.mxu0 0
    %431 = vmatpush1.bf16.msra.mxu0 %v410
    %432 = vmatprep.subr.bf16.mxu0 0
    %433 = vmatpush1.bf16.msra.mxu0 %v411
    %434 = vmatprep.subr.bf16.mxu0 0
    %435 = vmatpush1.bf16.msra.mxu0 %v412
    %436 = vmatprep.subr.bf16.mxu0 0
    %437 = vmatpush1.bf16.msra.mxu0 %v413
    %438 = vmatprep.subr.bf16.mxu0 0
    %439 = vmatpush1.bf16.msra.mxu0 0
    %440 = vmatprep.subr.bf16.mxu0 0
    %441 = vmatpush1.bf16.msra.mxu0 0
    %442 = vmatprep.subr.bf16.mxu0 0
    %443 = vmatpush1.bf16.msra.mxu0 0
    %444 = vmatprep.subr.bf16.mxu0 0
    %445 = vmatpush1.bf16.msra.mxu0 0
    %446 = vmatprep.subr.bf16.mxu0 0
    %447 = vmatpush1.bf16.msra.mxu0 0
    %448 = vmatprep.subr.bf16.mxu0 0
    %449 = vmatpush1.bf16.msra.mxu0 0
    %450 = vmatprep.subr.bf16.mxu0 0
    %451 = vmatpush1.bf16.msra.mxu0 0
    %452 = vmatprep.subr.bf16.mxu0 0
    %453 = vmatpush1.bf16.msra.mxu0 0
    %454 = vmatprep.mubr.bf16.mxu0 0
    %455 = vmatmul.mubr.bf16.gmra.mrb[0].mxu0 %v350
    %v456 = vpop.f32.mrb[0].mxu0
    %v457 = vadd.f32 %v372, %v456
    %v458 = vpop.f32.mrb[0].mxu0
    %v459 = vpop.f32.mrb[0].mxu0
    %v460 = vpop.f32.mrb[0].mxu0
    %461 = vdwg.mxu0
    %v462 = vmax.f32 %v457, 0.0
    %v463 = vpack.c.bf16 %v462, %v462
    %v464 = vld [vmem:[#allocation10] sm:$0xf]
    %v465 = vld [vmem:[#allocation10 + $0x4] sm:$0xf]
    %v466 = vld [vmem:[#allocation10 + $0x8] sm:$0xf]
    %v467 = vld [vmem:[#allocation10 + $0xc] sm:$0xf]
    %v468 = vld [vmem:[#allocation10 + $0x10] sm:$0xf]
    %v469 = vld [vmem:[#allocation10 + $0x14] sm:$0xf]
    %v470 = vld [vmem:[#allocation10 + $0x18] sm:$0xf]
    %v471 = vld [vmem:[#allocation10 + $0x1c] sm:$0xf]
    %v472 = vld [vmem:[#allocation10 + $0x20] sm:$0xf]
    %v473 = vld [vmem:[#allocation10 + $0x24] sm:$0xf]
    %v474 = vld [vmem:[#allocation10 + $0x28] sm:$0xf]
    %v475 = vld [vmem:[#allocation10 + $0x2c] sm:$0xf]
    %v476 = vld [vmem:[#allocation10 + $0x30] sm:$0xf]
    %v477 = vld [vmem:[#allocation10 + $0x34] sm:$0xf]
    %v478 = vld [vmem:[#allocation10 + $0x38] sm:$0xf]
    %v479 = vld [vmem:[#allocation10 + $0x3c] sm:$0xf]
    %v480 = vld [vmem:[%s8] sm:$0x1]
    %v482 = vlaneseq
    %v483 = vshrl.u32 %v482, 7
    %v484 = vsub.s32 0, %v483
    %v485 = vrot.slane %v480, %v484
    %v503 = vunpack.c.l.b16 %v464
    %v504 = vunpack.c.l.b16 %v465
    %v505 = vunpack.c.l.b16 %v466
    %v506 = vunpack.c.l.b16 %v467
    %v507 = vunpack.c.l.b16 %v468
    %v508 = vunpack.c.l.b16 %v469
    %v509 = vunpack.c.l.b16 %v470
    %v510 = vunpack.c.l.b16 %v471
    %v511 = vunpack.c.l.b16 %v472
    %v512 = vunpack.c.l.b16 %v473
    %v513 = vunpack.c.l.b16 %v474
    %v514 = vunpack.c.l.b16 %v475
    %v515 = vunpack.c.l.b16 %v476
    %v516 = vunpack.c.l.b16 %v477
    %v517 = vunpack.c.l.b16 %v478
    %v518 = vunpack.c.l.b16 %v479
    %v519 = vpack.c.b16 %v504, %v503
    %v520 = vpack.c.b16 %v506, %v505
    %v521 = vpack.c.b16 %v508, %v507
    %v522 = vpack.c.b16 %v510, %v509
    %v523 = vpack.c.b16 %v512, %v511
    %v524 = vpack.c.b16 %v514, %v513
    %v525 = vpack.c.b16 %v516, %v515
    %v526 = vpack.c.b16 %v518, %v517
    %535 = vmatprep.subr.bf16.mxu0 0
    %536 = vmatpush1.bf16.msra.mxu0 %v519
    %537 = vmatprep.subr.bf16.mxu0 0
    %538 = vmatpush1.bf16.msra.mxu0 %v520
    %539 = vmatprep.subr.bf16.mxu0 0
    %540 = vmatpush1.bf16.msra.mxu0 %v521
    %541 = vmatprep.subr.bf16.mxu0 0
    %542 = vmatpush1.bf16.msra.mxu0 %v522
    %543 = vmatprep.subr.bf16.mxu0 0
    %544 = vmatpush1.bf16.msra.mxu0 %v523
    %545 = vmatprep.subr.bf16.mxu0 0
    %546 = vmatpush1.bf16.msra.mxu0 %v524
    %547 = vmatprep.subr.bf16.mxu0 0
    %548 = vmatpush1.bf16.msra.mxu0 %v525
    %549 = vmatprep.subr.bf16.mxu0 0
    %550 = vmatpush1.bf16.msra.mxu0 %v526
    %551 = vmatprep.subr.bf16.mxu0 0
    %552 = vmatpush1.bf16.msra.mxu0 0
    %553 = vmatprep.subr.bf16.mxu0 0
    %554 = vmatpush1.bf16.msra.mxu0 0
    %555 = vmatprep.subr.bf16.mxu0 0
    %556 = vmatpush1.bf16.msra.mxu0 0
    %557 = vmatprep.subr.bf16.mxu0 0
    %558 = vmatpush1.bf16.msra.mxu0 0
    %559 = vmatprep.subr.bf16.mxu0 0
    %560 = vmatpush1.bf16.msra.mxu0 0
    %561 = vmatprep.subr.bf16.mxu0 0
    %562 = vmatpush1.bf16.msra.mxu0 0
    %563 = vmatprep.subr.bf16.mxu0 0
    %564 = vmatpush1.bf16.msra.mxu0 0
    %565 = vmatprep.subr.bf16.mxu0 0
    %566 = vmatpush1.bf16.msra.mxu0 0
    %567 = vmatprep.mubr.bf16.mxu0 0
    %568 = vmatmul.mubr.bf16.gmra.mrb[0].mxu0 %v463
    %v569 = vpop.f32.mrb[0].mxu0
    %v570 = vadd.f32 %v485, %v569
    %v571 = vpop.f32.mrb[0].mxu0
    %v572 = vpop.f32.mrb[0].mxu0
    %v573 = vpop.f32.mrb[0].mxu0
    %574 = vdwg.mxu0
    %v575 = vtanh.pop %v570
    %v576 = vmul.f32 %v575, 2.0
    %577 = vst [vmem:[#allocation11] sm:$0xff] %v576
    // Predicated region
    $region58: #{tpu_custom_call.1} parent=1 // pred_check
      _
    $region59: #{tpu_custom_call.1} parent=1 // pred_check_branch
      %579 = sbr.rel (0) target = $region61
    $region60: #{tpu_custom_call.1} parent=1 // pred_region
      %s581 = ssub.s32 128, 128
      %582 = vsyncadd [#allocation4], %s581
      %s584 = sshll.u32 [#allocation11], 4
      %s585 = int_to_ptr.vmem [resolvable:$true] %s584
      %587 = dma.vmem_to_hbm [thread:$0]  %s585, 128, %s9, [#allocation4]
    $region61: #{tpu_custom_call.1} parent=1 // pred_fallthru
      _
    // Predicated region
    $region62: #{tpu_custom_call.1} parent=1 // pred_check
      _
    $region63: #{tpu_custom_call.1} parent=1 // pred_check_branch
      %589 = sbr.rel (0) target = $region65
    $region64: #{tpu_custom_call.1} parent=1 // pred_region
      %590 = dma.done [#allocation4], 128
    $region65: #{tpu_custom_call.1} parent=1 // pred_fallthru
      _
    %591 = vsyncpa [#allocation3], 1
    %592 = vsyncpa [#allocation6], 1
    %593 = vsyncpa [#allocation9], 1
    %594 = vsyncpa [#allocation4], 1

</llo_original>
